<compile_context>
chip_gen: v6e
topology: v6e:2x2x1
jax: 0.10.0
libtpu: 0.0.40
codegen_flags: <defaults>
</compile_context>

<pallas_src>
import functools

import jax
import jax.numpy as jnp
from jax import lax
from jax.experimental import pallas as pl
from jax.experimental.pallas import tpu as pltpu


def _round_up(x, m):
    return ((x + m - 1) // m) * m


def _chip_kind():
    """Best-effort TPU generation detection (safe fallbacks)."""
    try:
        kind = jax.devices()[0].device_kind.lower()
    except Exception:
        kind = ""
    is_v5e = ("v5 lite" in kind) or ("v5e" in kind) or ("v5lite" in kind)
    is_v7 = "7" in kind
    return is_v5e, is_v7


def _contrastive_loss_kernel(inv_temp_ref, vis_ref, text_ref, bias_ref,
                             loss_ref, vis_s_scr, m_scr, s_scr, d_scr,
                             *, mask_cols, exp_bf16):
    """Grid: (row_tiles [parallel], col_tiles [arbitrary])."""
    i = pl.program_id(0)
    j = pl.program_id(1)
    n_col = pl.num_programs(1)
    tile_m = vis_ref.shape[0]
    tile_n = text_ref.shape[1]
    eps_sq = 1e-24  # (F.normalize eps)**2 ; rsqrt(max(sumsq, eps^2)) == 1/max(||x||, eps)

    # --- once per row tile: normalize vis rows, fold in 1/T, cast to operand dtype ---
    @pl.when(j == 0)
    def _init():
        vis = vis_ref[...].astype(jnp.float32)                              # [tm, D]
        scale = lax.rsqrt(jnp.maximum(jnp.sum(vis * vis, axis=1, keepdims=True),
                                      eps_sq)) * inv_temp_ref[0]
        vis_s_scr[...] = (vis * scale).astype(vis_s_scr.dtype)
        m_scr[...] = jnp.full_like(m_scr, -1e30)
        s_scr[...] = jnp.zeros_like(s_scr)
        d_scr[...] = jnp.zeros_like(d_scr)

    # logits tile: natural NN matmul (text pre-transposed to [D, padded_n]).
    logits = jnp.dot(vis_s_scr[...], text_ref[...],
                     preferred_element_type=jnp.float32)                    # [tm, tn]

    if mask_cols:
        # Single broadcast add of a precomputed [1, tile_n] additive bias
        # (0 for real columns, -1e30 for padded ones).
        logits = logits + bias_ref[...]

    # --- diagonal extraction: only on the step whose column range covers the rows ---
    row_start = i * tile_m
    col_start = j * tile_n
    intersects = jnp.logical_and(col_start < row_start + tile_m,
                                 col_start + tile_n > row_start)

    @pl.when(intersects)
    def _diag():
        row_ids = lax.broadcasted_iota(jnp.int32, logits.shape, 0) + row_start
        col_ids = lax.broadcasted_iota(jnp.int32, logits.shape, 1) + col_start
        d_scr[...] += jnp.sum(jnp.where(row_ids == col_ids, logits, 0.0),
                              axis=1, keepdims=True)

    # --- online logsumexp over the column sweep ---
    m_prev = m_scr[...]
    m_new = jnp.maximum(m_prev, jnp.max(logits, axis=1, keepdims=True))
    alpha = jnp.exp(m_prev - m_new)
    if exp_bf16:
        # bf16 EUP exp (args are <= 0 after max subtraction); accumulate in f32.
        p_sum = jnp.sum(jnp.exp((logits - m_new).astype(jnp.bfloat16)),
                        axis=1, keepdims=True, dtype=jnp.float32)
    else:
        p_sum = jnp.sum(jnp.exp(logits - m_new), axis=1, keepdims=True)
    s_scr[...] = s_scr[...] * alpha + p_sum
    m_scr[...] = m_new

    @pl.when(j == n_col - 1)
    def _finalize():
        loss_ref[...] = m_scr[...] + jnp.log(s_scr[...]) - d_scr[...]


def contrastive_loss(vis_features, text_features, temperature=0.07,
                     block_m=None, block_n=512,
                     matmul_in_bf16=None, exp_in_bf16=False):
    """Pallas TPU implementation of MHSAN ContrastiveLoss.forward."""
    assert vis_features.ndim == 2 and text_features.ndim == 2
    assert vis_features.shape == text_features.shape
    B, D = vis_features.shape

    is_v5e, is_v7 = _chip_kind()
    if block_m is None:
        # v5e is compute-bound at 256; v6e/v7x need >=512 to beat the HBM
        # balance point of the text re-stream.
        block_m = 256 if is_v5e else 512

    in_bf16 = (vis_features.dtype == jnp.bfloat16
               and text_features.dtype == jnp.bfloat16)
    if matmul_in_bf16 is None:
        matmul_in_bf16 = in_bf16
    op_dtype = jnp.bfloat16 if matmul_in_bf16 else jnp.float32
    op_itemsize = jnp.dtype(op_dtype).itemsize

    row_align = 16 if op_dtype == jnp.bfloat16 else 8
    lane = 128

    # --- tile selection (lane-dense columns, sublane-aligned rows) ---
    padded_m = _round_up(B, row_align)
    tile_m = min(padded_m, _round_up(block_m, row_align))
    # v7x has two TensorCores sharing the "parallel" row axis: prefer grid_m >= 2.
    if (is_v7 and padded_m == tile_m and padded_m >= 2 * row_align
            and (padded_m // 2) % row_align == 0):
        tile_m = padded_m // 2
    padded_m = _round_up(padded_m, tile_m)

    padded_n = _round_up(B, lane)
    tile_n = min(padded_n, _round_up(block_n, lane))
    padded_n = _round_up(padded_n, tile_n)

    grid_m = padded_m // tile_m
    grid_n = padded_n // tile_n
    mask_cols = padded_n != B

    # --- wrapper-side prep: pad vis, pre-normalize + transpose text, column bias ---
    vis_p = vis_features if padded_m == B else jnp.pad(
        vis_features, ((0, padded_m - B), (0, 0)))

    eps_sq = 1e-24
    text_f32 = text_features.astype(jnp.float32)
    text_norm = text_f32 * lax.rsqrt(
        jnp.maximum(jnp.sum(text_f32 * text_f32, axis=1, keepdims=True), eps_sq))
    text_t = jnp.pad(text_norm, ((0, padded_n - B), (0, 0))).T.astype(op_dtype)  # [D, padded_n]

    col_bias = jnp.where(jnp.arange(padded_n) < B, 0.0, -1e30)
    col_bias = col_bias.astype(jnp.float32).reshape(1, padded_n)

    inv_temp = jnp.ones((1,), jnp.float32) / jnp.asarray(temperature, jnp.float32)

    # --- explicit VMEM budget (double-buffered blocks + scratches + temporaries) ---
    vis_itemsize = jnp.dtype(vis_features.dtype).itemsize
    block_bytes = 2 * (tile_m * D * vis_itemsize
                       + D * tile_n * op_itemsize
                       + tile_n * 4)                      # vis, text, bias blocks
    scratch_bytes = tile_m * D * op_itemsize + 3 * tile_m * 4
    temp_bytes = 6 * tile_m * tile_n * 4                  # logits / exp temporaries
    budget = block_bytes + scratch_bytes + temp_bytes + 2 * tile_m * 4
    cap = (56 << 20) if is_v7 else (100 << 20)            # v7x: 64 MiB physical per TC
    vmem_limit = min(max(32 << 20, int(budget * 3) // 2), cap)

    cost = pl.CostEstimate(
        flops=2 * padded_m * padded_n * D + 8 * B * D,
        transcendentals=padded_m * padded_n + 3 * B,
        bytes_accessed=(padded_m * D * vis_itemsize
                        + grid_m * padded_n * D * op_itemsize   # text re-stream
                        + grid_m * padded_n * 4                 # bias re-stream
                        + padded_m * 4 + 4),
    )

    kernel = functools.partial(
        _contrastive_loss_kernel,
        mask_cols=mask_cols,
        exp_bf16=bool(exp_in_bf16) and not is_v5e,  # v5e has no bf16 EUP path
    )

    per_row = pl.pallas_call(
        kernel,
        out_shape=jax.ShapeDtypeStruct((padded_m, 1), jnp.float32),
        grid_spec=pltpu.PrefetchScalarGridSpec(
            num_scalar_prefetch=0,
            grid=(grid_m, grid_n),
            in_specs=[
                pl.BlockSpec(memory_space=pltpu.MemorySpace.SMEM),     # 1/temperature
                pl.BlockSpec((tile_m, D), lambda i, j: (i, 0)),        # vis rows (revisited, DMA'd once per i)
                pl.BlockSpec((D, tile_n), lambda i, j: (0, j)),        # pre-normalized text^T column sweep
                pl.BlockSpec((1, tile_n), lambda i, j: (0, j)),        # padded-column additive bias
            ],
            out_specs=pl.BlockSpec((tile_m, 1), lambda i, j: (i, 0)),
            scratch_shapes=[
                pltpu.VMEM((tile_m, D), op_dtype),      # cached normalized/scaled vis rows
                pltpu.VMEM((tile_m, 1), jnp.float32),   # running max
                pltpu.VMEM((tile_m, 1), jnp.float32),   # running sum
                pltpu.VMEM((tile_m, 1), jnp.float32),   # diagonal accumulator
            ],
        ),
        compiler_params=pltpu.CompilerParams(
            dimension_semantics=("parallel", "arbitrary"),
            vmem_limit_bytes=vmem_limit),
        cost_estimate=cost,
    )(inv_temp, vis_p, text_t, col_bias)

    # Final scalar mean over the real batch rows (tiny XLA reduce).
    return jnp.mean(per_row[:B, 0])


def _reference_loss(vis, text, temperature=0.07):
    # Pure-JAX reference mirroring the PyTorch module, for sanity checking.
    vis_n = vis / jnp.maximum(jnp.linalg.norm(vis, axis=1, keepdims=True), 1e-12)
    text_n = text / jnp.maximum(jnp.linalg.norm(text, axis=1, keepdims=True), 1e-12)
    logits = vis_n @ text_n.T / temperature
    lse = jax.scipy.special.logsumexp(logits, axis=1)
    diag = jnp.diagonal(logits)
    return jnp.mean(lse - diag)


if __name__ == "__main__":
    key = jax.random.PRNGKey(0)
    k1, k2 = jax.random.split(key)

    B, D = 8, 32  # batch of paired (visual, text) features
    vis_features = jax.random.normal(k1, (B, D), dtype=jnp.float32)
    text_features = jax.random.normal(k2, (B, D), dtype=jnp.float32)

    loss = contrastive_loss(vis_features, text_features, temperature=0.07)
    loss = jax.block_until_ready(loss)

    ref = _reference_loss(vis_features, text_features, temperature=0.07)
    assert jnp.allclose(loss, ref, atol=1e-4, rtol=1e-4), (loss, ref)

    print("KERNEL_OK")
</pallas_src>

<mosaic_0001>
module attributes {stable_mosaic.version = 11 : i64} {
  func.func @_contrastive_loss_kernel(%arg0: i32, %arg1: i32, %arg2: memref<1xf32, #tpu.memory_space<smem>>, %arg3: memref<8x32xf32, #tpu.memory_space<vmem>>, %arg4: memref<32x128xf32, #tpu.memory_space<vmem>>, %arg5: memref<1x128xf32, #tpu.memory_space<vmem>>, %arg6: memref<8x1xf32, #tpu.memory_space<vmem>>, %arg7: memref<8x32xf32, #tpu.memory_space<vmem>>, %arg8: memref<8x1xf32, #tpu.memory_space<vmem>>, %arg9: memref<8x1xf32, #tpu.memory_space<vmem>>, %arg10: memref<8x1xf32, #tpu.memory_space<vmem>>) attributes {dimension_semantics = [#tpu.dimension_semantics<parallel>, #tpu.dimension_semantics<arbitrary>], iteration_bounds = array<i64: 1, 1>, scalar_prefetch = 0 : i64, scratch_operands = 4 : i64, tpu.core_type = #tpu.core_type<tc>, window_params = [{transform_indices = @transform_0, window_bounds = array<i64: 1>}, {transform_indices = @transform_1, window_bounds = array<i64: 8, 32>}, {transform_indices = @transform_2, window_bounds = array<i64: 32, 128>}, {transform_indices = @transform_3, window_bounds = array<i64: 1, 128>}, {transform_indices = @transform_4, window_bounds = array<i64: 8, 1>}]} {
    %c0_i32 = arith.constant 0 : i32
    %0 = arith.cmpi eq, %arg1, %c0_i32 : i32
    %1 = arith.extui %0 : i1 to i32
    %c0_i32_0 = arith.constant 0 : i32
    %2 = arith.cmpi ne, %1, %c0_i32_0 : i32
    scf.if %2 {
      %c0_21 = arith.constant 0 : index
      %c0_22 = arith.constant 0 : index
      %37 = vector.load %arg3[%c0_21, %c0_22] : memref<8x32xf32, #tpu.memory_space<vmem>>, vector<8x32xf32>
      %38 = arith.mulf %37, %37 : vector<8x32xf32>
      %cst_23 = arith.constant dense<0.000000e+00> : vector<8xf32>
      %39 = vector.multi_reduction <add>, %38, %cst_23 [1] : vector<8x32xf32> to vector<8xf32>
      %40 = vector.shape_cast %39 : vector<8xf32> to vector<8x1xf32>
      %cst_24 = arith.constant 1.000000e-24 : f32
      %41 = vector.broadcast %cst_24 : f32 to vector<8x1xf32>
      %42 = arith.maximumf %40, %41 : vector<8x1xf32>
      %43 = math.rsqrt %42 : vector<8x1xf32>
      %c0_25 = arith.constant 0 : index
      %44 = memref.load %arg2[%c0_25] : memref<1xf32, #tpu.memory_space<smem>>
      %45 = vector.broadcast %44 : f32 to vector<8x1xf32>
      %46 = arith.mulf %43, %45 : vector<8x1xf32>
      %47 = vector.broadcast %46 : vector<8x1xf32> to vector<8x32xf32>
      %48 = arith.mulf %37, %47 : vector<8x32xf32>
      %c0_26 = arith.constant 0 : index
      %c0_27 = arith.constant 0 : index
      %49 = vector.load %arg7[%c0_26, %c0_27] : memref<8x32xf32, #tpu.memory_space<vmem>>, vector<8x32xf32>
      tpu.vector_store %arg7[%c0_26, %c0_27], %48 {strides = array<i32>} : memref<8x32xf32, #tpu.memory_space<vmem>>, vector<8x32xf32>,
      %cst_28 = arith.constant -1.000000e+30 : f32
      %50 = vector.broadcast %cst_28 : f32 to vector<8x1xf32>
      %c0_29 = arith.constant 0 : index
      %c0_30 = arith.constant 0 : index
      %51 = vector.load %arg8[%c0_29, %c0_30] : memref<8x1xf32, #tpu.memory_space<vmem>>, vector<8x1xf32>
      tpu.vector_store %arg8[%c0_29, %c0_30], %50 {strides = array<i32>} : memref<8x1xf32, #tpu.memory_space<vmem>>, vector<8x1xf32>,
      %cst_31 = arith.constant 0.000000e+00 : f32
      %52 = vector.broadcast %cst_31 : f32 to vector<8x1xf32>
      %c0_32 = arith.constant 0 : index
      %c0_33 = arith.constant 0 : index
      %53 = vector.load %arg9[%c0_32, %c0_33] : memref<8x1xf32, #tpu.memory_space<vmem>>, vector<8x1xf32>
      tpu.vector_store %arg9[%c0_32, %c0_33], %52 {strides = array<i32>} : memref<8x1xf32, #tpu.memory_space<vmem>>, vector<8x1xf32>,
      %cst_34 = arith.constant 0.000000e+00 : f32
      %54 = vector.broadcast %cst_34 : f32 to vector<8x1xf32>
      %c0_35 = arith.constant 0 : index
      %c0_36 = arith.constant 0 : index
      %55 = vector.load %arg10[%c0_35, %c0_36] : memref<8x1xf32, #tpu.memory_space<vmem>>, vector<8x1xf32>
      tpu.vector_store %arg10[%c0_35, %c0_36], %54 {strides = array<i32>} : memref<8x1xf32, #tpu.memory_space<vmem>>, vector<8x1xf32>,
    } else {
    }
    %c0 = arith.constant 0 : index
    %c0_1 = arith.constant 0 : index
    %3 = vector.load %arg7[%c0, %c0_1] : memref<8x32xf32, #tpu.memory_space<vmem>>, vector<8x32xf32>
    %c0_2 = arith.constant 0 : index
    %c0_3 = arith.constant 0 : index
    %4 = vector.load %arg4[%c0_2, %c0_3] : memref<32x128xf32, #tpu.memory_space<vmem>>, vector<32x128xf32>
    %cst = arith.constant dense<0.000000e+00> : vector<8x128xf32>
    %5 = tpu.matmul %3, %4, %cst {dimension_numbers = #tpu.dot_dimension_numbers<[1], [0], [0], [1], [0, 0, 1, 1], [], []>} : vector<8x32xf32>, vector<32x128xf32>, vector<8x128xf32> -> vector<8x128xf32>
    %c0_4 = arith.constant 0 : index
    %c0_5 = arith.constant 0 : index
    %6 = vector.load %arg5[%c0_4, %c0_5] : memref<1x128xf32, #tpu.memory_space<vmem>>, vector<1x128xf32>
    %7 = vector.broadcast %6 : vector<1x128xf32> to vector<8x128xf32>
    %8 = arith.addf %5, %7 : vector<8x128xf32>
    %c8_i32 = arith.constant 8 : i32
    %9 = arith.muli %arg0, %c8_i32 : i32
    %c128_i32 = arith.constant 128 : i32
    %10 = arith.muli %arg1, %c128_i32 : i32
    %c8_i32_6 = arith.constant 8 : i32
    %11 = arith.addi %9, %c8_i32_6 : i32
    %12 = arith.cmpi slt, %10, %11 : i32
    %c128_i32_7 = arith.constant 128 : i32
    %13 = arith.addi %10, %c128_i32_7 : i32
    %14 = arith.cmpi sgt, %13, %9 : i32
    %15 = arith.andi %12, %14 : i1
    %16 = arith.extui %15 : i1 to i32
    %c0_i32_8 = arith.constant 0 : i32
    %17 = arith.cmpi ne, %16, %c0_i32_8 : i32
    scf.if %17 {
      %37 = tpu.iota {dimensions = array<i32: 0>} : vector<8x128xi32>
      %38 = vector.broadcast %9 : i32 to vector<8x128xi32>
      %39 = arith.addi %37, %38 : vector<8x128xi32>
      %40 = tpu.iota {dimensions = array<i32: 1>} : vector<8x128xi32>
      %41 = vector.broadcast %10 : i32 to vector<8x128xi32>
      %42 = arith.addi %40, %41 : vector<8x128xi32>
      %c0_21 = arith.constant 0 : index
      %c0_22 = arith.constant 0 : index
      %43 = vector.load %arg10[%c0_21, %c0_22] : memref<8x1xf32, #tpu.memory_space<vmem>>, vector<8x1xf32>
      %44 = arith.cmpi eq, %39, %42 : vector<8x128xi32>
      %cst_23 = arith.constant 0.000000e+00 : f32
      %45 = vector.broadcast %cst_23 : f32 to vector<8x128xf32>
      %46 = arith.select %44, %8, %45 : vector<8x128xi1>, vector<8x128xf32>
      %cst_24 = arith.constant dense<0.000000e+00> : vector<8xf32>
      %47 = vector.multi_reduction <add>, %46, %cst_24 [1] : vector<8x128xf32> to vector<8xf32>
      %48 = vector.shape_cast %47 : vector<8xf32> to vector<8x1xf32>
      %49 = arith.addf %43, %48 : vector<8x1xf32>
      %c0_25 = arith.constant 0 : index
      %c0_26 = arith.constant 0 : index
      %50 = vector.load %arg10[%c0_25, %c0_26] : memref<8x1xf32, #tpu.memory_space<vmem>>, vector<8x1xf32>
      tpu.vector_store %arg10[%c0_25, %c0_26], %49 {strides = array<i32>} : memref<8x1xf32, #tpu.memory_space<vmem>>, vector<8x1xf32>,
    } else {
    }
    %c0_9 = arith.constant 0 : index
    %c0_10 = arith.constant 0 : index
    %18 = vector.load %arg8[%c0_9, %c0_10] : memref<8x1xf32, #tpu.memory_space<vmem>>, vector<8x1xf32>
    %cst_11 = arith.constant dense<0xFF800000> : vector<8xf32>
    %19 = vector.multi_reduction <maximumf>, %8, %cst_11 [1] : vector<8x128xf32> to vector<8xf32>
    %20 = vector.shape_cast %19 : vector<8xf32> to vector<8x1xf32>
    %21 = arith.maximumf %18, %20 : vector<8x1xf32>
    %22 = arith.subf %18, %21 : vector<8x1xf32>
    %23 = math.exp %22 : vector<8x1xf32>
    %24 = vector.broadcast %21 : vector<8x1xf32> to vector<8x128xf32>
    %25 = arith.subf %8, %24 : vector<8x128xf32>
    %26 = math.exp %25 : vector<8x128xf32>
    %cst_12 = arith.constant dense<0.000000e+00> : vector<8xf32>
    %27 = vector.multi_reduction <add>, %26, %cst_12 [1] : vector<8x128xf32> to vector<8xf32>
    %28 = vector.shape_cast %27 : vector<8xf32> to vector<8x1xf32>
    %c0_13 = arith.constant 0 : index
    %c0_14 = arith.constant 0 : index
    %29 = vector.load %arg9[%c0_13, %c0_14] : memref<8x1xf32, #tpu.memory_space<vmem>>, vector<8x1xf32>
    %30 = arith.mulf %29, %23 : vector<8x1xf32>
    %31 = arith.addf %30, %28 : vector<8x1xf32>
    %c0_15 = arith.constant 0 : index
    %c0_16 = arith.constant 0 : index
    %32 = vector.load %arg9[%c0_15, %c0_16] : memref<8x1xf32, #tpu.memory_space<vmem>>, vector<8x1xf32>
    tpu.vector_store %arg9[%c0_15, %c0_16], %31 {strides = array<i32>} : memref<8x1xf32, #tpu.memory_space<vmem>>, vector<8x1xf32>,
    %c0_17 = arith.constant 0 : index
    %c0_18 = arith.constant 0 : index
    %33 = vector.load %arg8[%c0_17, %c0_18] : memref<8x1xf32, #tpu.memory_space<vmem>>, vector<8x1xf32>
    tpu.vector_store %arg8[%c0_17, %c0_18], %21 {strides = array<i32>} : memref<8x1xf32, #tpu.memory_space<vmem>>, vector<8x1xf32>,
    %c0_i32_19 = arith.constant 0 : i32
    %34 = arith.cmpi eq, %arg1, %c0_i32_19 : i32
    %35 = arith.extui %34 : i1 to i32
    %c0_i32_20 = arith.constant 0 : i32
    %36 = arith.cmpi ne, %35, %c0_i32_20 : i32
    scf.if %36 {
      %c0_21 = arith.constant 0 : index
      %c0_22 = arith.constant 0 : index
      %37 = vector.load %arg8[%c0_21, %c0_22] : memref<8x1xf32, #tpu.memory_space<vmem>>, vector<8x1xf32>
      %c0_23 = arith.constant 0 : index
      %c0_24 = arith.constant 0 : index
      %38 = vector.load %arg9[%c0_23, %c0_24] : memref<8x1xf32, #tpu.memory_space<vmem>>, vector<8x1xf32>
      %39 = math.log %38 : vector<8x1xf32>
      %40 = arith.addf %37, %39 : vector<8x1xf32>
      %c0_25 = arith.constant 0 : index
      %c0_26 = arith.constant 0 : index
      %41 = vector.load %arg10[%c0_25, %c0_26] : memref<8x1xf32, #tpu.memory_space<vmem>>, vector<8x1xf32>
      %42 = arith.subf %40, %41 : vector<8x1xf32>
      %c0_27 = arith.constant 0 : index
      %c0_28 = arith.constant 0 : index
      %43 = vector.load %arg6[%c0_27, %c0_28] : memref<8x1xf32, #tpu.memory_space<vmem>>, vector<8x1xf32>
      tpu.vector_store %arg6[%c0_27, %c0_28], %42 {strides = array<i32>} : memref<8x1xf32, #tpu.memory_space<vmem>>, vector<8x1xf32>,
    } else {
    }
    return
  }
  func.func @transform_0(%arg0: i32, %arg1: i32) -> i32 {
    %c0_i32 = arith.constant 0 : i32
    %c0_i32_0 = arith.constant 0 : i32
    return %c0_i32 : i32
  }
  func.func @transform_1(%arg0: i32, %arg1: i32) -> (i32, i32) {
    %c0_i32 = arith.constant 0 : i32
    %c0_i32_0 = arith.constant 0 : i32
    return %arg0, %c0_i32 : i32, i32
  }
  func.func @transform_2(%arg0: i32, %arg1: i32) -> (i32, i32) {
    %c0_i32 = arith.constant 0 : i32
    %c0_i32_0 = arith.constant 0 : i32
    return %c0_i32, %arg1 : i32, i32
  }
  func.func @transform_3(%arg0: i32, %arg1: i32) -> (i32, i32) {
    %c0_i32 = arith.constant 0 : i32
    %c0_i32_0 = arith.constant 0 : i32
    return %c0_i32, %arg1 : i32, i32
  }
  func.func @transform_4(%arg0: i32, %arg1: i32) -> (i32, i32) {
    %c0_i32 = arith.constant 0 : i32
    %c0_i32_0 = arith.constant 0 : i32
    return %arg0, %c0_i32 : i32, i32
  }
}

</mosaic_0001>

<llo_original>
// kernel: tpu_custom_call.1
$region0: #{tpu_custom_call.1}
  #allocation0 [shape = 'u32[]', space=smem, size = 0x4, offset = 0x4, fixed_abs, tag = 'smem constant byte address 0x4 - core index']
  #allocation1 [shape = 'u32[144,128]{1,0:T(1,128)}', space=vmem, size = 0x12000, scoped, tag = 'internal scratch']
  #allocation2 [shape = 'f32[8,32]{1,0:T(8,128)}', space=vmem, size = 0x1000, scoped, tag = 'scratch operand']
  #allocation3 [shape = 'f32[8,1]{1,0:T(8,128)}', space=vmem, size = 0x1000, scoped, tag = 'scratch operand']
  #allocation4 [shape = 'f32[8,1]{1,0:T(8,128)}', space=vmem, size = 0x1000, scoped, tag = 'scratch operand']
  #allocation5 [shape = 'f32[8,1]{1,0:T(8,128)}', space=vmem, size = 0x1000, scoped, tag = 'scratch operand']
  #allocation6 [shape = 'f32[1]{0:T(128)S(6)}', space=smem, size = 0x200, scoped, tag = 'scoped memory for tpu_custom_call.1']
  %s0 = inlined_call_operand.<no memory space> [shape: f32[1], index: 0, kind: input, shape index: {}]
  %s1 = inlined_call_operand.hbm [shape: f32[8,32], index: 1, kind: input, shape index: {}]
  %s2 = inlined_call_operand.hbm [shape: f32[32,128], index: 2, kind: input, shape index: {}]
  %s3 = inlined_call_operand.vmem [shape: f32[1,128], index: 3, kind: input, shape index: {}]
  %s4 = inlined_call_operand.vmem [shape: f32[8,1], index: 4, kind: output, shape index: {}]
  %s5 = sld [smem:[#allocation0]]
  $region46: #{tpu_custom_call.1} parent=0
    _
  %s7 = ssub.s32 1, %s5
  %s8 = scalar_select 0, %s7, %s5
  %9 = sst [smem:[#allocation6]] %s0
  $region1: #{tpu_custom_call.1} parent=0
    #allocation7 [shape = 'u8[4096]{0}', space=vmem, size = 0x1000, scoped, tag = 'input window, operand 1, single buffered']
    #allocation8 [shape = 's32[1]{0}', space=sflag, size = 0x4, scoped, tag = 'scoped memory for tpu_custom_call.1']
    #allocation9 [shape = 'u8[16384]{0}', space=vmem, size = 0x4000, scoped, tag = 'input window, operand 2, single buffered']
    #allocation10 [shape = 's32[1]{0}', space=sflag, size = 0x4, scoped, tag = 'scoped memory for tpu_custom_call.1']
    %10 = vsyncpa [#allocation8], 0
    %11 = vsyncpa [#allocation10], 0
    // Predicated region
    $region2: #{tpu_custom_call.1} parent=1 // pred_check
      _
    $region3: #{tpu_custom_call.1} parent=1 // pred_check_branch
      %13 = sbr.rel (0) target = $region5
    $region4: #{tpu_custom_call.1} parent=1 // pred_region
      _
    $region5: #{tpu_custom_call.1} parent=1 // pred_fallthru
      _
    // Predicated region
    $region6: #{tpu_custom_call.1} parent=1 // pred_check
      _
    $region7: #{tpu_custom_call.1} parent=1 // pred_check_branch
      %15 = sbr.rel (0) target = $region9
    $region8: #{tpu_custom_call.1} parent=1 // pred_region
      %s17 = ssub.s32 128, 128
      %18 = vsyncadd [#allocation8], %s17
      %s20 = sshll.u32 [#allocation7], 4
      %s21 = int_to_ptr.vmem [resolvable:$true] %s20
      %23 = dma.hbm_to_vmem [thread:$0]  %s1, 128, %s21, [#allocation8]
    $region9: #{tpu_custom_call.1} parent=1 // pred_fallthru
      _
    // Predicated region
    $region10: #{tpu_custom_call.1} parent=1 // pred_check
      _
    $region11: #{tpu_custom_call.1} parent=1 // pred_check_branch
      %25 = sbr.rel (0) target = $region13
    $region12: #{tpu_custom_call.1} parent=1 // pred_region
      %s27 = ssub.s32 512, 512
      %28 = vsyncadd [#allocation10], %s27
      %s29 = sshll.u32 [#allocation9], 4
      %s30 = int_to_ptr.vmem [resolvable:$true] %s29
      %35 = dma.hbm_to_vmem [thread:$0]  %s2, 512, %s30, [#allocation10], 128, 128, 8
    $region13: #{tpu_custom_call.1} parent=1 // pred_fallthru
      _
    // Predicated region
    $region14: #{tpu_custom_call.1} parent=1 // pred_check
      _
    $region15: #{tpu_custom_call.1} parent=1 // pred_check_branch
      %37 = sbr.rel (0) target = $region17
    $region16: #{tpu_custom_call.1} parent=1 // pred_region
      _
    $region17: #{tpu_custom_call.1} parent=1 // pred_fallthru
      _
    // Predicated region
    $region18: #{tpu_custom_call.1} parent=1 // pred_check
      _
    $region19: #{tpu_custom_call.1} parent=1 // pred_check_branch
      %39 = sbr.rel (0) target = $region21
    $region20: #{tpu_custom_call.1} parent=1 // pred_region
      %40 = dma.done [#allocation8], 128
    $region21: #{tpu_custom_call.1} parent=1 // pred_fallthru
      _
    // Predicated region
    $region22: #{tpu_custom_call.1} parent=1 // pred_check
      _
    $region23: #{tpu_custom_call.1} parent=1 // pred_check_branch
      %42 = sbr.rel (0) target = $region25
    $region24: #{tpu_custom_call.1} parent=1 // pred_region
      %43 = dma.done [#allocation10], 512
    $region25: #{tpu_custom_call.1} parent=1 // pred_fallthru
      _
    %p44 = scmp.eq.s32.totalorder 0, 0
    // Predicated region
    $region26: #{tpu_custom_call.1} parent=1 // pred_check
      %p45 = pneg %p44
    $region27: #{tpu_custom_call.1} parent=1 // pred_check_branch
      %47 = sbr.rel (%p45) target = $region29
    $region28: #{tpu_custom_call.1} parent=1 // pred_region
      %v48 = vld [vmem:[#allocation7] sm:$0xff]
      %v49 = vmul.f32 %v48, %v48
      %vm50 = vcmask 261120
      %v51 = vsel %vm50, %v49, 0.0
      %52 = vadd.xlane.f32.xlu0 %v51
      %v53 = vpop.xlane.xlu0 %52
      %v54 = vmax.f32 %v53, 1e-24
      %v55 = vrsqrt.pop %v54
      %s56 = sld [smem:[#allocation6]]
      %v57 = vstv %s56
      %v58 = vmul.f32 %v55, %v57
      %v59 = vmul.f32 %v48, %v58
      %60 = vst.msk [vmem:[#allocation2] sm:$0xff] %vm50, %v59
      %vm61 = vcmask 7168
      %62 = vst.msk [vmem:[#allocation3] sm:$0xff] %vm61, -1e+30
      %63 = vst.msk [vmem:[#allocation4] sm:$0xff] %vm61, 0.0
      %64 = vst.msk [vmem:[#allocation5] sm:$0xff] %vm61, 0.0
    $region29: #{tpu_custom_call.1} parent=1 // pred_fallthru
      _
    %v65 = vld [vmem:[#allocation2] sm:$0xff]
    %v66 = vld [vmem:[#allocation9] sm:$0xff]
    %v67 = vld [vmem:[#allocation9 + $0x8] sm:$0xff]
    %v68 = vld [vmem:[#allocation9 + $0x10] sm:$0xff]
    %v69 = vld [vmem:[#allocation9 + $0x18] sm:$0xff]
    %v70 = vld [vmem:[%s3] sm:$0x1]
    %v72 = vlaneseq
    %v73 = vshrl.u32 %v72, 7
    %v74 = vsub.s32 0, %v73
    %v75 = vrot.slane %v70, %v74
    %vm77 = vcmask 261120
    %v79 = vsel %vm77, %v65, 0
    %81 = vmatprep.subr.mxu0 0.0
    %82 = vmatpush1.msra.mxu0 0.0
    %83 = vmatprep.subr.mxu0 0.0
    %84 = vmatpush1.msra.mxu0 0.0
    %85 = vmatprep.subr.mxu0 0.0
    %86 = vmatpush1.msra.mxu0 0.0
    %87 = vmatprep.subr.mxu0 0.0
    %88 = vmatpush1.msra.mxu0 0.0
    %89 = vmatprep.subr.mxu0 0.0
    %90 = vmatpush1.msra.mxu0 0.0
    %91 = vmatprep.subr.mxu0 0.0
    %92 = vmatpush1.msra.mxu0 0.0
    %93 = vmatprep.subr.mxu0 0.0
    %94 = vmatpush1.msra.mxu0 0.0
    %95 = vmatprep.subr.mxu0 0.0
    %96 = vmatpush1.msra.mxu0 0.0
    %97 = vmatprep.subr.mxu0 0.0
    %98 = vmatpush1.msra.mxu0 0.0
    %99 = vmatprep.subr.mxu0 0.0
    %100 = vmatpush1.msra.mxu0 0.0
    %101 = vmatprep.subr.mxu0 0.0
    %102 = vmatpush1.msra.mxu0 0.0
    %103 = vmatprep.subr.mxu0 0.0
    %104 = vmatpush1.msra.mxu0 0.0
    %105 = vmatprep.subr.mxu0 0.0
    %106 = vmatpush1.msra.mxu0 %v69
    %107 = vmatprep.subr.mxu0 0.0
    %108 = vmatpush1.msra.mxu0 %v68
    %109 = vmatprep.subr.mxu0 0.0
    %110 = vmatpush1.msra.mxu0 %v67
    %111 = vmatprep.subr.mxu0 0.0
    %112 = vmatpush1.msra.mxu0 %v66
    %113 = vmatprep.subr.mxu0 0.0
    %114 = vmatpush2.msra.mxu0 0.0
    %115 = vmatprep.subr.mxu0 0.0
    %116 = vmatpush2.msra.mxu0 0.0
    %117 = vmatprep.subr.mxu0 0.0
    %118 = vmatpush2.msra.mxu0 0.0
    %119 = vmatprep.subr.mxu0 0.0
    %120 = vmatpush2.msra.mxu0 0.0
    %121 = vmatprep.subr.mxu0 0.0
    %122 = vmatpush2.msra.mxu0 0.0
    %123 = vmatprep.subr.mxu0 0.0
    %124 = vmatpush2.msra.mxu0 0.0
    %125 = vmatprep.subr.mxu0 0.0
    %126 = vmatpush2.msra.mxu0 0.0
    %127 = vmatprep.subr.mxu0 0.0
    %128 = vmatpush2.msra.mxu0 0.0
    %129 = vmatprep.subr.mxu0 0.0
    %130 = vmatpush2.msra.mxu0 0.0
    %131 = vmatprep.subr.mxu0 0.0
    %132 = vmatpush2.msra.mxu0 0.0
    %133 = vmatprep.subr.mxu0 0.0
    %134 = vmatpush2.msra.mxu0 0.0
    %135 = vmatprep.subr.mxu0 0.0
    %136 = vmatpush2.msra.mxu0 0.0
    %137 = vmatprep.subr.mxu0 0.0
    %138 = vmatpush2.msra.mxu0 0.0
    %139 = vmatprep.subr.mxu0 0.0
    %140 = vmatpush2.msra.mxu0 0.0
    %141 = vmatprep.subr.mxu0 0.0
    %142 = vmatpush2.msra.mxu0 0.0
    %143 = vmatprep.subr.mxu0 0.0
    %144 = vmatpush2.msra.mxu0 0.0
    %145 = vmatprep.mubr.f32.mxu0 0.0
    %146 = vmatmul.mubr.f32.gmra.mxu0 %v79
    %v147 = vpop.f32.mrf.mxu0
    %v148 = vadd.f32 %v75, %v147
    %v149 = vpop.f32.mrf.mxu0
    %150 = vdwg.mxu0
    %s151 = smul.u32 0, 8
    %s152 = smul.u32 0, 128
    %s153 = sadd.s32 %s151, 8
    %p154 = scmp.lt.s32.totalorder %s152, %s153
    %s155 = sadd.s32 %s152, 128
    %p156 = scmp.gt.s32.totalorder %s155, %s151
    %p157 = pnand %p154, %p156
    %p158 = pneg %p157
    // Predicated region
    $region30: #{tpu_custom_call.1} parent=1 // pred_check
      _
    $region31: #{tpu_custom_call.1} parent=1 // pred_check_branch
      %160 = sbr.rel (%p157) target = $region33
    $region32: #{tpu_custom_call.1} parent=1 // pred_region
      %v161 = vlaneseq
      %v162 = vshrl.u32 %v161, 7
      %v163 = vstv %s151
      %v164 = vadd.s32 %v162, %v163
      %v165 = vlaneseq
      %v166 = vand.u32 %v165, 127
      %v167 = vstv %s152
      %v168 = vadd.s32 %v166, %v167
      %v169 = vld [vmem:[#allocation5] sm:$0xff]
      %vm170 = vcmp.eq.s32.totalorder %v164, %v168
      %v171 = vsel %vm170, %v148, 0.0
      %172 = vadd.xlane.f32.xlu0 %v171
      %v173 = vpop.xlane.xlu0 %172
      %v174 = vadd.f32 %v169, %v173
      %vm175 = vcmask 7168
      %176 = vst.msk [vmem:[#allocation5] sm:$0xff] %vm175, %v174
    $region33: #{tpu_custom_call.1} parent=1 // pred_fallthru
      _
    %v177 = vld [vmem:[#allocation3] sm:$0xff]
    %178 = vmax.xlane.f32.xlu0 %v148
    %v179 = vpop.xlane.xlu0 %178
    %v180 = vmax.f32 %v177, %v179
    %v181 = vsub.f32 %v177, %v180
    %v182 = vmul.f32 %v181, 1.442695
    %v183 = vpow.pop %v182
    %185 = vset.pattern.permute.xlu0 0
    %186 = vperm.xlu0 %185, %v180
    %v187 = vpop.permute.xlu0 %186
    %v189 = vsub.f32 %v148, %v187
    %v190 = vmul.f32 %v189, 1.442695
    %v191 = vpow.pop %v190
    %192 = vadd.xlane.f32.xlu0 %v191
    %v193 = vpop.xlane.xlu0 %192
    %v194 = vld [vmem:[#allocation4] sm:$0xff]
    %v195 = vmul.f32 %v194, %v183
    %v196 = vadd.f32 %v195, %v193
    %vm197 = vcmask 7168
    %198 = vst.msk [vmem:[#allocation4] sm:$0xff] %vm197, %v196
    %199 = vst.msk [vmem:[#allocation3] sm:$0xff] %vm197, %v180
    // Predicated region
    $region34: #{tpu_custom_call.1} parent=1 // pred_check
      %p200 = pneg %p44
    $region35: #{tpu_custom_call.1} parent=1 // pred_check_branch
      %202 = sbr.rel (%p200) target = $region37
    $region36: #{tpu_custom_call.1} parent=1 // pred_region
      %v203 = vld [vmem:[#allocation3] sm:$0xff]
      %v204 = vld [vmem:[#allocation4] sm:$0xff]
      %v205 = vlog2.pop %v204
      %v206 = vmul.f32 %v205, 0.6931472
      %v207 = vadd.f32 %v203, %v206
      %v208 = vld [vmem:[#allocation5] sm:$0xff]
      %v209 = vsub.f32 %v207, %v208
      %210 = vst.msk [vmem:[%s4] sm:$0xff] %vm197, %v209
    $region37: #{tpu_custom_call.1} parent=1 // pred_fallthru
      _
    // Predicated region
    $region38: #{tpu_custom_call.1} parent=1 // pred_check
      _
    $region39: #{tpu_custom_call.1} parent=1 // pred_check_branch
      %212 = sbr.rel (0) target = $region41
    $region40: #{tpu_custom_call.1} parent=1 // pred_region
      _
    $region41: #{tpu_custom_call.1} parent=1 // pred_fallthru
      _
    // Predicated region
    $region42: #{tpu_custom_call.1} parent=1 // pred_check
      _
    $region43: #{tpu_custom_call.1} parent=1 // pred_check_branch
      %214 = sbr.rel (0) target = $region45
    $region44: #{tpu_custom_call.1} parent=1 // pred_region
      _
    $region45: #{tpu_custom_call.1} parent=1 // pred_fallthru
      _
    %215 = vsyncpa [#allocation8], 1
    %216 = vsyncpa [#allocation10], 1

</llo_original>
